<compile_context>
chip_gen: v6e
topology: v6e:2x2x1
jax: 0.10.0
libtpu: 0.0.40
codegen_flags: <defaults>
</compile_context>

<pallas_src>
import functools

import jax
import jax.numpy as jnp
from jax.experimental import pallas as pl
from jax.experimental.pallas import tpu as pltpu


def _round_up(x, m):
    return ((x + m - 1) // m) * m


def _decoder_kernel(z_ref,
                    w1_ref, b1_ref,
                    w2_ref, b2_ref,
                    w3_ref, b3_ref,
                    w4_ref, b4_ref,
                    out_ref):
    # Four fused Linear layers for one row-tile: bf16 MXU operands, f32
    # accumulation, f32 bias + nonlinearity epilogues (v5e-safe).
    h = jnp.dot(z_ref[...].astype(jnp.bfloat16), w1_ref[...],
                preferred_element_type=jnp.float32)
    h = jnp.maximum(h + b1_ref[...], 0.0)

    h = jnp.dot(h.astype(jnp.bfloat16), w2_ref[...],
                preferred_element_type=jnp.float32)
    h = jnp.maximum(h + b2_ref[...], 0.0)

    h = jnp.dot(h.astype(jnp.bfloat16), w3_ref[...],
                preferred_element_type=jnp.float32)
    h = jnp.maximum(h + b3_ref[...], 0.0)

    h = jnp.dot(h.astype(jnp.bfloat16), w4_ref[...],
                preferred_element_type=jnp.float32)
    logits = h + b4_ref[...]
    # sigmoid = 1 / (1 + exp(-x)); exp on EUP, divide replaced by approx
    # reciprocal (also EUP) so the epilogue stays off the VALU.
    out_ref[...] = pl.reciprocal(1.0 + jnp.exp(-logits),
                                 approx=True).astype(out_ref.dtype)


def prepare_params(params):
    """One-time weight prep (hoisted out of the per-call path).

    Casts weights to bf16 and zero-pads every layer's output dim to a multiple
    of 128 lanes so all intermediates / the output are full-lane slabs.  The
    first layer's input dim stays at code_size so z can be DMA'd unpadded.
    """
    prepped = {}
    prev_in = params["w1"].shape[0]  # code_size, unpadded (matches raw z)
    for i in range(1, 5):
        w = params[f"w{i}"]
        b = params[f"b{i}"]
        out_pad = _round_up(w.shape[1], 128)
        w_p = jnp.zeros((prev_in, out_pad), jnp.bfloat16)
        w_p = w_p.at[:w.shape[0], :w.shape[1]].set(w.astype(jnp.bfloat16))
        b_p = jnp.zeros((1, out_pad), jnp.float32)
        b_p = b_p.at[:, :b.shape[1]].set(b.astype(jnp.float32))
        prepped[f"w{i}"] = w_p
        prepped[f"b{i}"] = b_p
        prev_in = out_pad
    return prepped


@functools.partial(jax.jit, static_argnames=("out_features", "max_block_rows"))
def decoder_gumbel_forward(z, prepped, *, out_features, max_block_rows=1024):
    """z: [B, code_size] float32.  prepped: output of prepare_params()."""
    B, code_size = z.shape
    assert prepped["w1"].shape[0] == code_size
    out_pad = prepped["w4"].shape[1]

    # Overhead-bound kernel: 1 grid step normally; 2 steps when B is large so
    # both v7x TensorCores get a row-tile.  Tile capped at max_block_rows.
    num_splits = 2 if B > 256 else 1
    tm = min(max_block_rows, _round_up(-(-B // num_splits), 8))
    b_pad = _round_up(B, tm)
    grid = (b_pad // tm,)

    # Rows padded only when B doesn't divide the tile (no column pad, no cast:
    # the bf16 cast happens in-kernel).
    z_in = z if b_pad == B else jnp.pad(z, ((0, b_pad - B), (0, 0)))

    # Constant index_map => block is grid-invariant, DMA'd once, VMEM-resident.
    def resident(a):
        return pl.BlockSpec(a.shape, lambda i: (0,) * a.ndim)

    out_padded = pl.pallas_call(
        _decoder_kernel,
        out_shape=jax.ShapeDtypeStruct((b_pad, out_pad), jnp.float32),
        grid=grid,
        in_specs=[
            # last dim == full array dim (code_size), so unpadded z is legal
            pl.BlockSpec((tm, code_size), lambda i: (i, 0)),
            resident(prepped["w1"]), resident(prepped["b1"]),
            resident(prepped["w2"]), resident(prepped["b2"]),
            resident(prepped["w3"]), resident(prepped["b3"]),
            resident(prepped["w4"]), resident(prepped["b4"]),
        ],
        out_specs=pl.BlockSpec((tm, out_pad), lambda i: (i, 0)),
        compiler_params=pltpu.CompilerParams(
            dimension_semantics=("parallel",),       # split batch over TCs (v7x)
            vmem_limit_bytes=16 * 1024 * 1024,       # actual need ~6 MiB at tm=1024
        ),
    )(z_in, prepped["w1"], prepped["b1"], prepped["w2"], prepped["b2"],
      prepped["w3"], prepped["b3"], prepped["w4"], prepped["b4"])

    return out_padded[:B, :out_features]


def init_params(key, input_size, code_size):
    """Deterministic init mimicking PyTorch Linear default (U(-1/sqrt(fan_in), +))."""
    dims = [code_size, input_size * 16, input_size * 4, input_size * 2, input_size]
    params = {}
    for i in range(4):
        fan_in, fan_out = dims[i], dims[i + 1]
        key, kw, kb = jax.random.split(key, 3)
        bound = 1.0 / jnp.sqrt(jnp.float32(fan_in))
        # stored as [in, out] (transposed vs. PyTorch's [out, in]) for x @ W
        params[f"w{i+1}"] = jax.random.uniform(
            kw, (fan_in, fan_out), jnp.float32, -bound, bound)
        params[f"b{i+1}"] = jax.random.uniform(
            kb, (1, fan_out), jnp.float32, -bound, bound)
    return params


def reference_forward(z, params):
    x = jnp.maximum(z @ params["w1"] + params["b1"], 0.0)
    x = jnp.maximum(x @ params["w2"] + params["b2"], 0.0)
    x = jnp.maximum(x @ params["w3"] + params["b3"], 0.0)
    x = jax.nn.sigmoid(x @ params["w4"] + params["b4"])
    return x


if __name__ == "__main__":
    categorical_size = 10
    latent_size = 20
    code_size = latent_size * categorical_size  # 200
    input_size = 16

    key = jax.random.PRNGKey(0)
    params = init_params(key, input_size, code_size)
    prepped = prepare_params(params)   # one-time pad/cast, off the per-call path

    # bf16 MXU operands + approx reciprocal -> relaxed tolerance vs. f32 reference.
    ATOL = 2e-2

    # Case 1: small batch matching the original module usage (single grid step).
    key, kz = jax.random.split(key)
    z_small = jax.random.normal(kz, (8, code_size), jnp.float32)
    out_small = jax.block_until_ready(
        decoder_gumbel_forward(z_small, prepped, out_features=input_size))
    ref_small = reference_forward(z_small, params)
    assert out_small.shape == (8, input_size), out_small.shape
    assert jnp.allclose(out_small, ref_small, atol=ATOL, rtol=ATOL), "small-batch mismatch"

    # Case 2: larger batch -> 2 grid steps (one row-tile per v7x TensorCore),
    # weights VMEM-resident across both.
    key, kz = jax.random.split(key)
    z_big = jax.random.normal(kz, (512, code_size), jnp.float32)
    out_big = jax.block_until_ready(
        decoder_gumbel_forward(z_big, prepped, out_features=input_size))
    ref_big = reference_forward(z_big, params)
    assert out_big.shape == (512, input_size), out_big.shape
    assert jnp.allclose(out_big, ref_big, atol=ATOL, rtol=ATOL), "batched mismatch"

    print("KERNEL_OK")
</pallas_src>

<mosaic_0001>
module attributes {stable_mosaic.version = 11 : i64} {
  func.func @_decoder_kernel(%arg0: i32, %arg1: memref<8x200xf32, #tpu.memory_space<vmem>>, %arg2: memref<200x256xbf16, #tpu.memory_space<vmem>>, %arg3: memref<1x256xf32, #tpu.memory_space<vmem>>, %arg4: memref<256x128xbf16, #tpu.memory_space<vmem>>, %arg5: memref<1x128xf32, #tpu.memory_space<vmem>>, %arg6: memref<128x128xbf16, #tpu.memory_space<vmem>>, %arg7: memref<1x128xf32, #tpu.memory_space<vmem>>, %arg8: memref<128x128xbf16, #tpu.memory_space<vmem>>, %arg9: memref<1x128xf32, #tpu.memory_space<vmem>>, %arg10: memref<8x128xf32, #tpu.memory_space<vmem>>) attributes {dimension_semantics = [#tpu.dimension_semantics<parallel>], iteration_bounds = array<i64: 1>, scalar_prefetch = 0 : i64, scratch_operands = 0 : i64, tpu.core_type = #tpu.core_type<tc>, window_params = [{transform_indices = @transform_0, window_bounds = array<i64: 8, 200>}, {pipeline_mode = #tpu.pipeline_mode<synchronous>, transform_indices = @transform_1, window_bounds = array<i64: 200, 256>}, {pipeline_mode = #tpu.pipeline_mode<synchronous>, transform_indices = @transform_2, window_bounds = array<i64: 1, 256>}, {pipeline_mode = #tpu.pipeline_mode<synchronous>, transform_indices = @transform_3, window_bounds = array<i64: 256, 128>}, {pipeline_mode = #tpu.pipeline_mode<synchronous>, transform_indices = @transform_4, window_bounds = array<i64: 1, 128>}, {pipeline_mode = #tpu.pipeline_mode<synchronous>, transform_indices = @transform_5, window_bounds = array<i64: 128, 128>}, {pipeline_mode = #tpu.pipeline_mode<synchronous>, transform_indices = @transform_6, window_bounds = array<i64: 1, 128>}, {pipeline_mode = #tpu.pipeline_mode<synchronous>, transform_indices = @transform_7, window_bounds = array<i64: 128, 128>}, {pipeline_mode = #tpu.pipeline_mode<synchronous>, transform_indices = @transform_8, window_bounds = array<i64: 1, 128>}, {transform_indices = @transform_9, window_bounds = array<i64: 8, 128>}]} {
    %c0 = arith.constant 0 : index
    %c0_0 = arith.constant 0 : index
    %0 = vector.load %arg1[%c0, %c0_0] : memref<8x200xf32, #tpu.memory_space<vmem>>, vector<8x200xf32>
    %1 = arith.truncf %0 : vector<8x200xf32> to vector<8x200xbf16>
    %c0_1 = arith.constant 0 : index
    %c0_2 = arith.constant 0 : index
    %2 = vector.load %arg2[%c0_1, %c0_2] : memref<200x256xbf16, #tpu.memory_space<vmem>>, vector<200x256xbf16>
    %cst = arith.constant dense<0.000000e+00> : vector<8x256xf32>
    %3 = tpu.matmul %1, %2, %cst {dimension_numbers = #tpu.dot_dimension_numbers<[1], [0], [0], [1], [0, 0, 1, 1], [], []>} : vector<8x200xbf16>, vector<200x256xbf16>, vector<8x256xf32> -> vector<8x256xf32>
    %c0_3 = arith.constant 0 : index
    %c0_4 = arith.constant 0 : index
    %4 = vector.load %arg3[%c0_3, %c0_4] : memref<1x256xf32, #tpu.memory_space<vmem>>, vector<1x256xf32>
    %5 = vector.broadcast %4 : vector<1x256xf32> to vector<8x256xf32>
    %6 = arith.addf %3, %5 : vector<8x256xf32>
    %cst_5 = arith.constant 0.000000e+00 : f32
    %7 = vector.broadcast %cst_5 : f32 to vector<8x256xf32>
    %8 = arith.maximumf %6, %7 : vector<8x256xf32>
    %9 = arith.truncf %8 : vector<8x256xf32> to vector<8x256xbf16>
    %c0_6 = arith.constant 0 : index
    %c0_7 = arith.constant 0 : index
    %10 = vector.load %arg4[%c0_6, %c0_7] : memref<256x128xbf16, #tpu.memory_space<vmem>>, vector<256x128xbf16>
    %cst_8 = arith.constant dense<0.000000e+00> : vector<8x128xf32>
    %11 = tpu.matmul %9, %10, %cst_8 {dimension_numbers = #tpu.dot_dimension_numbers<[1], [0], [0], [1], [0, 0, 1, 1], [], []>} : vector<8x256xbf16>, vector<256x128xbf16>, vector<8x128xf32> -> vector<8x128xf32>
    %c0_9 = arith.constant 0 : index
    %c0_10 = arith.constant 0 : index
    %12 = vector.load %arg5[%c0_9, %c0_10] : memref<1x128xf32, #tpu.memory_space<vmem>>, vector<1x128xf32>
    %13 = vector.broadcast %12 : vector<1x128xf32> to vector<8x128xf32>
    %14 = arith.addf %11, %13 : vector<8x128xf32>
    %cst_11 = arith.constant 0.000000e+00 : f32
    %15 = vector.broadcast %cst_11 : f32 to vector<8x128xf32>
    %16 = arith.maximumf %14, %15 : vector<8x128xf32>
    %17 = arith.truncf %16 : vector<8x128xf32> to vector<8x128xbf16>
    %c0_12 = arith.constant 0 : index
    %c0_13 = arith.constant 0 : index
    %18 = vector.load %arg6[%c0_12, %c0_13] : memref<128x128xbf16, #tpu.memory_space<vmem>>, vector<128x128xbf16>
    %cst_14 = arith.constant dense<0.000000e+00> : vector<8x128xf32>
    %19 = tpu.matmul %17, %18, %cst_14 {dimension_numbers = #tpu.dot_dimension_numbers<[1], [0], [0], [1], [0, 0, 1, 1], [], []>} : vector<8x128xbf16>, vector<128x128xbf16>, vector<8x128xf32> -> vector<8x128xf32>
    %c0_15 = arith.constant 0 : index
    %c0_16 = arith.constant 0 : index
    %20 = vector.load %arg7[%c0_15, %c0_16] : memref<1x128xf32, #tpu.memory_space<vmem>>, vector<1x128xf32>
    %21 = vector.broadcast %20 : vector<1x128xf32> to vector<8x128xf32>
    %22 = arith.addf %19, %21 : vector<8x128xf32>
    %cst_17 = arith.constant 0.000000e+00 : f32
    %23 = vector.broadcast %cst_17 : f32 to vector<8x128xf32>
    %24 = arith.maximumf %22, %23 : vector<8x128xf32>
    %25 = arith.truncf %24 : vector<8x128xf32> to vector<8x128xbf16>
    %c0_18 = arith.constant 0 : index
    %c0_19 = arith.constant 0 : index
    %26 = vector.load %arg8[%c0_18, %c0_19] : memref<128x128xbf16, #tpu.memory_space<vmem>>, vector<128x128xbf16>
    %cst_20 = arith.constant dense<0.000000e+00> : vector<8x128xf32>
    %27 = tpu.matmul %25, %26, %cst_20 {dimension_numbers = #tpu.dot_dimension_numbers<[1], [0], [0], [1], [0, 0, 1, 1], [], []>} : vector<8x128xbf16>, vector<128x128xbf16>, vector<8x128xf32> -> vector<8x128xf32>
    %c0_21 = arith.constant 0 : index
    %c0_22 = arith.constant 0 : index
    %28 = vector.load %arg9[%c0_21, %c0_22] : memref<1x128xf32, #tpu.memory_space<vmem>>, vector<1x128xf32>
    %29 = vector.broadcast %28 : vector<1x128xf32> to vector<8x128xf32>
    %30 = arith.addf %27, %29 : vector<8x128xf32>
    %cst_23 = arith.constant 0.000000e+00 : f32
    %31 = vector.broadcast %cst_23 : f32 to vector<8x128xf32>
    %32 = arith.subf %31, %30 : vector<8x128xf32>
    %33 = math.exp %32 : vector<8x128xf32>
    %cst_24 = arith.constant 1.000000e+00 : f32
    %34 = vector.broadcast %cst_24 : f32 to vector<8x128xf32>
    %35 = arith.addf %34, %33 : vector<8x128xf32>
    %36 = tpu.reciprocal %35 {approx = true} : vector<8x128xf32> -> vector<8x128xf32>
    %c0_25 = arith.constant 0 : index
    %c0_26 = arith.constant 0 : index
    %37 = vector.load %arg10[%c0_25, %c0_26] : memref<8x128xf32, #tpu.memory_space<vmem>>, vector<8x128xf32>
    tpu.vector_store %arg10[%c0_25, %c0_26], %36 {strides = array<i32>} : memref<8x128xf32, #tpu.memory_space<vmem>>, vector<8x128xf32>,
    return
  }
  func.func @transform_0(%arg0: i32) -> (i32, i32) {
    %c0_i32 = arith.constant 0 : i32
    %c0_i32_0 = arith.constant 0 : i32
    return %arg0, %c0_i32 : i32, i32
  }
  func.func @transform_1(%arg0: i32) -> (i32, i32) {
    %c0_i32 = arith.constant 0 : i32
    %c0_i32_0 = arith.constant 0 : i32
    %c0_i32_1 = arith.constant 0 : i32
    return %c0_i32, %c0_i32_0 : i32, i32
  }
  func.func @transform_2(%arg0: i32) -> (i32, i32) {
    %c0_i32 = arith.constant 0 : i32
    %c0_i32_0 = arith.constant 0 : i32
    %c0_i32_1 = arith.constant 0 : i32
    return %c0_i32, %c0_i32_0 : i32, i32
  }
  func.func @transform_3(%arg0: i32) -> (i32, i32) {
    %c0_i32 = arith.constant 0 : i32
    %c0_i32_0 = arith.constant 0 : i32
    %c0_i32_1 = arith.constant 0 : i32
    return %c0_i32, %c0_i32_0 : i32, i32
  }
  func.func @transform_4(%arg0: i32) -> (i32, i32) {
    %c0_i32 = arith.constant 0 : i32
    %c0_i32_0 = arith.constant 0 : i32
    %c0_i32_1 = arith.constant 0 : i32
    return %c0_i32, %c0_i32_0 : i32, i32
  }
  func.func @transform_5(%arg0: i32) -> (i32, i32) {
    %c0_i32 = arith.constant 0 : i32
    %c0_i32_0 = arith.constant 0 : i32
    %c0_i32_1 = arith.constant 0 : i32
    return %c0_i32, %c0_i32_0 : i32, i32
  }
  func.func @transform_6(%arg0: i32) -> (i32, i32) {
    %c0_i32 = arith.constant 0 : i32
    %c0_i32_0 = arith.constant 0 : i32
    %c0_i32_1 = arith.constant 0 : i32
    return %c0_i32, %c0_i32_0 : i32, i32
  }
  func.func @transform_7(%arg0: i32) -> (i32, i32) {
    %c0_i32 = arith.constant 0 : i32
    %c0_i32_0 = arith.constant 0 : i32
    %c0_i32_1 = arith.constant 0 : i32
    return %c0_i32, %c0_i32_0 : i32, i32
  }
  func.func @transform_8(%arg0: i32) -> (i32, i32) {
    %c0_i32 = arith.constant 0 : i32
    %c0_i32_0 = arith.constant 0 : i32
    %c0_i32_1 = arith.constant 0 : i32
    return %c0_i32, %c0_i32_0 : i32, i32
  }
  func.func @transform_9(%arg0: i32) -> (i32, i32) {
    %c0_i32 = arith.constant 0 : i32
    %c0_i32_0 = arith.constant 0 : i32
    return %arg0, %c0_i32 : i32, i32
  }
}

</mosaic_0001>

<llo_original>
// kernel: decoder_gumbel_forward.1
$region0: #{decoder_gumbel_forward.1}
  #allocation0 [shape = 'u32[]', space=smem, size = 0x4, offset = 0x4, fixed_abs, tag = 'smem constant byte address 0x4 - core index']
  #allocation1 [shape = 'u32[144,128]{1,0:T(1,128)}', space=vmem, size = 0x12000, scoped, tag = 'internal scratch']
  %s0 = inlined_call_operand.hbm [shape: f32[8,200], index: 0, kind: input, shape index: {}]
  %s1 = inlined_call_operand.hbm [shape: bf16[200,256], index: 1, kind: input, shape index: {}]
  %s2 = inlined_call_operand.hbm [shape: f32[1,256], index: 2, kind: input, shape index: {}]
  %s3 = inlined_call_operand.hbm [shape: bf16[256,128], index: 3, kind: input, shape index: {}]
  %s4 = inlined_call_operand.vmem [shape: f32[1,128], index: 4, kind: input, shape index: {}]
  %s5 = inlined_call_operand.hbm [shape: bf16[128,128], index: 5, kind: input, shape index: {}]
  %s6 = inlined_call_operand.vmem [shape: f32[1,128], index: 6, kind: input, shape index: {}]
  %s7 = inlined_call_operand.hbm [shape: bf16[128,128], index: 7, kind: input, shape index: {}]
  %s8 = inlined_call_operand.vmem [shape: f32[1,128], index: 8, kind: input, shape index: {}]
  %s9 = inlined_call_operand.hbm [shape: f32[8,128], index: 9, kind: output, shape index: {}]
  %s10 = sld [smem:[#allocation0]]
  $region70: #{decoder_gumbel_forward.1} parent=0
    _
  %s12 = ssub.s32 1, %s10
  %s13 = scalar_select 0, %s12, %s10
  $region1: #{decoder_gumbel_forward.1} parent=0
    #allocation2 [shape = 'u8[8192]{0}', space=vmem, size = 0x2000, scoped, tag = 'input window, operand 0, single buffered']
    #allocation3 [shape = 's32[1]{0}', space=sflag, size = 0x4, scoped, tag = 'scoped memory for decoder_gumbel_forward.1']
    #allocation4 [shape = 's32[1]{0}', space=sflag, size = 0x4, scoped, tag = 'scoped memory for decoder_gumbel_forward.1']
    #allocation5 [shape = 'u8[102400]{0}', space=vmem, size = 0x19000, scoped, tag = 'input window, operand 1, single buffered']
    #allocation6 [shape = 's32[1]{0}', space=sflag, size = 0x4, scoped, tag = 'scoped memory for decoder_gumbel_forward.1']
    #allocation7 [shape = 'u8[1024]{0}', space=vmem, size = 0x400, scoped, tag = 'input window, operand 2, single buffered']
    #allocation8 [shape = 'u8[65536]{0}', space=vmem, size = 0x10000, scoped, tag = 'input window, operand 3, single buffered']
    #allocation9 [shape = 's32[1]{0}', space=sflag, size = 0x4, scoped, tag = 'scoped memory for decoder_gumbel_forward.1']
    #allocation10 [shape = 'u8[32768]{0}', space=vmem, size = 0x8000, scoped, tag = 'input window, operand 5, single buffered']
    #allocation11 [shape = 'u8[32768]{0}', space=vmem, size = 0x8000, scoped, tag = 'input window, operand 7, single buffered']
    #allocation12 [shape = 's32[1]{0}', space=sflag, size = 0x4, scoped, tag = 'scoped memory for decoder_gumbel_forward.1']
    #allocation13 [shape = 'u8[4096]{0}', space=vmem, size = 0x1000, scoped, tag = 'output window, operand 0, single buffered']
    %14 = vsyncpa [#allocation3], 0
    %15 = vsyncpa [#allocation6], 0
    %16 = vsyncpa [#allocation9], 0
    %17 = vsyncpa [#allocation12], 0
    %18 = vsyncpa [#allocation4], 0
    // Predicated region
    $region2: #{decoder_gumbel_forward.1} parent=1 // pred_check
      _
    $region3: #{decoder_gumbel_forward.1} parent=1 // pred_check_branch
      %20 = sbr.rel (0) target = $region5
    $region4: #{decoder_gumbel_forward.1} parent=1 // pred_region
      %s22 = ssub.s32 256, 256
      %23 = vsyncadd [#allocation3], %s22
      %s25 = sshll.u32 [#allocation2], 4
      %s26 = int_to_ptr.vmem [resolvable:$true] %s25
      %28 = dma.hbm_to_vmem [thread:$0]  %s0, 256, %s26, [#allocation3]
    $region5: #{decoder_gumbel_forward.1} parent=1 // pred_fallthru
      _
    // Predicated region
    $region6: #{decoder_gumbel_forward.1} parent=1 // pred_check
      _
    $region7: #{decoder_gumbel_forward.1} parent=1 // pred_check_branch
      %30 = sbr.rel (0) target = $region9
    $region8: #{decoder_gumbel_forward.1} parent=1 // pred_region
      %s32 = ssub.s32 3200, 3200
      %33 = vsyncadd [#allocation6], %s32
      %s34 = sshll.u32 [#allocation5], 4
      %s35 = int_to_ptr.vmem [resolvable:$true] %s34
      %40 = dma.hbm_to_vmem [thread:$0]  %s1, 3200, %s35, [#allocation6], 128, 128, 8
    $region9: #{decoder_gumbel_forward.1} parent=1 // pred_fallthru
      _
    // Predicated region
    $region10: #{decoder_gumbel_forward.1} parent=1 // pred_check
      _
    $region11: #{decoder_gumbel_forward.1} parent=1 // pred_check_branch
      %42 = sbr.rel (0) target = $region13
    $region12: #{decoder_gumbel_forward.1} parent=1 // pred_region
      %s44 = ssub.s32 32, 32
      %45 = vsyncadd [#allocation6], %s44
      %s47 = sshll.u32 [#allocation7], 4
      %s48 = int_to_ptr.vmem [resolvable:$true] %s47
      %50 = dma.hbm_to_vmem [thread:$0]  %s2, 32, %s48, [#allocation6]
    $region13: #{decoder_gumbel_forward.1} parent=1 // pred_fallthru
      _
    // Predicated region
    $region14: #{decoder_gumbel_forward.1} parent=1 // pred_check
      _
    $region15: #{decoder_gumbel_forward.1} parent=1 // pred_check_branch
      %52 = sbr.rel (0) target = $region17
    $region16: #{decoder_gumbel_forward.1} parent=1 // pred_region
      %s54 = ssub.s32 2048, 2048
      %55 = vsyncadd [#allocation9], %s54
      %s56 = sshll.u32 [#allocation8], 4
      %s57 = int_to_ptr.vmem [resolvable:$true] %s56
      %62 = dma.hbm_to_vmem [thread:$0]  %s3, 2048, %s57, [#allocation9], 64, 64, 4
    $region17: #{decoder_gumbel_forward.1} parent=1 // pred_fallthru
      _
    // Predicated region
    $region18: #{decoder_gumbel_forward.1} parent=1 // pred_check
      _
    $region19: #{decoder_gumbel_forward.1} parent=1 // pred_check_branch
      %64 = sbr.rel (0) target = $region21
    $region20: #{decoder_gumbel_forward.1} parent=1 // pred_region
      _
    $region21: #{decoder_gumbel_forward.1} parent=1 // pred_fallthru
      _
    // Predicated region
    $region22: #{decoder_gumbel_forward.1} parent=1 // pred_check
      _
    $region23: #{decoder_gumbel_forward.1} parent=1 // pred_check_branch
      %66 = sbr.rel (0) target = $region25
    $region24: #{decoder_gumbel_forward.1} parent=1 // pred_region
      %s68 = ssub.s32 1024, 1024
      %69 = vsyncadd [#allocation9], %s68
      %s70 = sshll.u32 [#allocation10], 4
      %s71 = int_to_ptr.vmem [resolvable:$true] %s70
      %76 = dma.hbm_to_vmem [thread:$0]  %s5, 1024, %s71, [#allocation9], 64, 64, 4
    $region25: #{decoder_gumbel_forward.1} parent=1 // pred_fallthru
      _
    // Predicated region
    $region26: #{decoder_gumbel_forward.1} parent=1 // pred_check
      _
    $region27: #{decoder_gumbel_forward.1} parent=1 // pred_check_branch
      %78 = sbr.rel (0) target = $region29
    $region28: #{decoder_gumbel_forward.1} parent=1 // pred_region
      _
    $region29: #{decoder_gumbel_forward.1} parent=1 // pred_fallthru
      _
    // Predicated region
    $region30: #{decoder_gumbel_forward.1} parent=1 // pred_check
      _
    $region31: #{decoder_gumbel_forward.1} parent=1 // pred_check_branch
      %80 = sbr.rel (0) target = $region33
    $region32: #{decoder_gumbel_forward.1} parent=1 // pred_region
      %s82 = ssub.s32 1024, 1024
      %83 = vsyncadd [#allocation12], %s82
      %s84 = sshll.u32 [#allocation11], 4
      %s85 = int_to_ptr.vmem [resolvable:$true] %s84
      %90 = dma.hbm_to_vmem [thread:$0]  %s7, 1024, %s85, [#allocation12], 64, 64, 4
    $region33: #{decoder_gumbel_forward.1} parent=1 // pred_fallthru
      _
    // Predicated region
    $region34: #{decoder_gumbel_forward.1} parent=1 // pred_check
      _
    $region35: #{decoder_gumbel_forward.1} parent=1 // pred_check_branch
      %92 = sbr.rel (0) target = $region37
    $region36: #{decoder_gumbel_forward.1} parent=1 // pred_region
      _
    $region37: #{decoder_gumbel_forward.1} parent=1 // pred_fallthru
      _
    // Predicated region
    $region38: #{decoder_gumbel_forward.1} parent=1 // pred_check
      _
    $region39: #{decoder_gumbel_forward.1} parent=1 // pred_check_branch
      %94 = sbr.rel (0) target = $region41
    $region40: #{decoder_gumbel_forward.1} parent=1 // pred_region
      %95 = dma.done [#allocation3], 256
    $region41: #{decoder_gumbel_forward.1} parent=1 // pred_fallthru
      _
    // Predicated region
    $region42: #{decoder_gumbel_forward.1} parent=1 // pred_check
      _
    $region43: #{decoder_gumbel_forward.1} parent=1 // pred_check_branch
      %97 = sbr.rel (0) target = $region45
    $region44: #{decoder_gumbel_forward.1} parent=1 // pred_region
      %98 = dma.done [#allocation6], 3200
    $region45: #{decoder_gumbel_forward.1} parent=1 // pred_fallthru
      _
    // Predicated region
    $region46: #{decoder_gumbel_forward.1} parent=1 // pred_check
      _
    $region47: #{decoder_gumbel_forward.1} parent=1 // pred_check_branch
      %100 = sbr.rel (0) target = $region49
    $region48: #{decoder_gumbel_forward.1} parent=1 // pred_region
      %101 = dma.done [#allocation6], 32
    $region49: #{decoder_gumbel_forward.1} parent=1 // pred_fallthru
      _
    // Predicated region
    $region50: #{decoder_gumbel_forward.1} parent=1 // pred_check
      _
    $region51: #{decoder_gumbel_forward.1} parent=1 // pred_check_branch
      %103 = sbr.rel (0) target = $region53
    $region52: #{decoder_gumbel_forward.1} parent=1 // pred_region
      %104 = dma.done [#allocation9], 2048
    $region53: #{decoder_gumbel_forward.1} parent=1 // pred_fallthru
      _
    // Predicated region
    $region54: #{decoder_gumbel_forward.1} parent=1 // pred_check
      _
    $region55: #{decoder_gumbel_forward.1} parent=1 // pred_check_branch
      %106 = sbr.rel (0) target = $region57
    $region56: #{decoder_gumbel_forward.1} parent=1 // pred_region
      %107 = dma.done [#allocation9], 1024
    $region57: #{decoder_gumbel_forward.1} parent=1 // pred_fallthru
      _
    // Predicated region
    $region58: #{decoder_gumbel_forward.1} parent=1 // pred_check
      _
    $region59: #{decoder_gumbel_forward.1} parent=1 // pred_check_branch
      %109 = sbr.rel (0) target = $region61
    $region60: #{decoder_gumbel_forward.1} parent=1 // pred_region
      %110 = dma.done [#allocation12], 1024
    $region61: #{decoder_gumbel_forward.1} parent=1 // pred_fallthru
      _
    %v112 = vld [vmem:[#allocation2] sm:$0xff]
    %v113 = vld [vmem:[#allocation2 + $0x8] sm:$0xff]
    %v114 = vpack.c.bf16 %v112, %v112
    %v115 = vpack.c.bf16 %v113, %v113
    %v116 = vld [vmem:[#allocation5] sm:$0xff]
    %v117 = vld [vmem:[#allocation5 + $0x8] sm:$0xff]
    %v118 = vld [vmem:[#allocation5 + $0x10] sm:$0xff]
    %v119 = vld [vmem:[#allocation5 + $0x18] sm:$0xff]
    %v120 = vld [vmem:[#allocation5 + $0x20] sm:$0xff]
    %v121 = vld [vmem:[#allocation5 + $0x28] sm:$0xff]
    %v122 = vld [vmem:[#allocation5 + $0x30] sm:$0xff]
    %v123 = vld [vmem:[#allocation5 + $0x38] sm:$0xff]
    %v124 = vld [vmem:[#allocation5 + $0x40] sm:$0xff]
    %v125 = vld [vmem:[#allocation5 + $0x48] sm:$0xff]
    %v126 = vld [vmem:[#allocation5 + $0x50] sm:$0xff]
    %v127 = vld [vmem:[#allocation5 + $0x58] sm:$0xff]
    %v128 = vld [vmem:[#allocation5 + $0x60] sm:$0xff]
    %v129 = vld [vmem:[#allocation5 + $0x68] sm:$0xff]
    %v130 = vld [vmem:[#allocation5 + $0x70] sm:$0xff]
    %v131 = vld [vmem:[#allocation5 + $0x78] sm:$0xff]
    %v132 = vld [vmem:[#allocation5 + $0x80] sm:$0xff]
    %v133 = vld [vmem:[#allocation5 + $0x88] sm:$0xff]
    %v134 = vld [vmem:[#allocation5 + $0x90] sm:$0xff]
    %v135 = vld [vmem:[#allocation5 + $0x98] sm:$0xff]
    %v136 = vld [vmem:[#allocation5 + $0xa0] sm:$0xff]
    %v137 = vld [vmem:[#allocation5 + $0xa8] sm:$0xff]
    %v138 = vld [vmem:[#allocation5 + $0xb0] sm:$0xff]
    %v139 = vld [vmem:[#allocation5 + $0xb8] sm:$0xff]
    %v140 = vld [vmem:[#allocation5 + $0xc0] sm:$0xff]
    %v141 = vld [vmem:[#allocation7] sm:$0x3]
    %v143 = vlaneseq
    %v144 = vshrl.u32 %v143, 7
    %v145 = vsub.s32 0, %v144
    %v146 = vrot.slane %v141, %v145
    %v147 = vlaneseq
    %v148 = vshrl.u32 %v147, 7
    %v149 = vsub.s32 1, %v148
    %v150 = vrot.slane %v141, %v149
    %v178 = vunpack.c.l.b16 %v116
    %v179 = vunpack.c.h.b16 %v116
    %v180 = vunpack.c.l.b16 %v117
    %v181 = vunpack.c.h.b16 %v117
    %v182 = vunpack.c.l.b16 %v118
    %v183 = vunpack.c.h.b16 %v118
    %v184 = vunpack.c.l.b16 %v119
    %v185 = vunpack.c.h.b16 %v119
    %v186 = vunpack.c.l.b16 %v120
    %v187 = vunpack.c.h.b16 %v120
    %v188 = vunpack.c.l.b16 %v121
    %v189 = vunpack.c.h.b16 %v121
    %v190 = vunpack.c.l.b16 %v122
    %v191 = vunpack.c.h.b16 %v122
    %v192 = vunpack.c.l.b16 %v123
    %v193 = vunpack.c.h.b16 %v123
    %v194 = vunpack.c.l.b16 %v124
    %v195 = vunpack.c.h.b16 %v124
    %v196 = vunpack.c.l.b16 %v125
    %v197 = vunpack.c.h.b16 %v125
    %v198 = vunpack.c.l.b16 %v126
    %v199 = vunpack.c.h.b16 %v126
    %v200 = vunpack.c.l.b16 %v127
    %v201 = vunpack.c.h.b16 %v127
    %v202 = vunpack.c.l.b16 %v128
    %v203 = vunpack.c.h.b16 %v128
    %v204 = vunpack.c.l.b16 %v129
    %v205 = vunpack.c.h.b16 %v129
    %v206 = vunpack.c.l.b16 %v130
    %v207 = vunpack.c.h.b16 %v130
    %v208 = vunpack.c.l.b16 %v131
    %v209 = vunpack.c.h.b16 %v131
    %v210 = vunpack.c.l.b16 %v132
    %v211 = vunpack.c.h.b16 %v132
    %v212 = vunpack.c.l.b16 %v133
    %v213 = vunpack.c.h.b16 %v133
    %v214 = vunpack.c.l.b16 %v134
    %v215 = vunpack.c.h.b16 %v134
    %v216 = vunpack.c.l.b16 %v135
    %v217 = vunpack.c.h.b16 %v135
    %v218 = vunpack.c.l.b16 %v136
    %v219 = vunpack.c.h.b16 %v136
    %v220 = vunpack.c.l.b16 %v137
    %v221 = vunpack.c.h.b16 %v137
    %v222 = vunpack.c.l.b16 %v138
    %v223 = vunpack.c.h.b16 %v138
    %v224 = vunpack.c.l.b16 %v139
    %v225 = vunpack.c.h.b16 %v139
    %v226 = vunpack.c.l.b16 %v140
    %v227 = vunpack.c.h.b16 %v140
    %v228 = vpack.c.b16 %v180, %v178
    %v229 = vpack.c.b16 %v181, %v179
    %v230 = vpack.c.b16 %v184, %v182
    %v231 = vpack.c.b16 %v185, %v183
    %v232 = vpack.c.b16 %v188, %v186
    %v233 = vpack.c.b16 %v189, %v187
    %v234 = vpack.c.b16 %v192, %v190
    %v235 = vpack.c.b16 %v193, %v191
    %v236 = vpack.c.b16 %v196, %v194
    %v237 = vpack.c.b16 %v197, %v195
    %v238 = vpack.c.b16 %v200, %v198
    %v239 = vpack.c.b16 %v201, %v199
    %v240 = vpack.c.b16 %v204, %v202
    %v241 = vpack.c.b16 %v205, %v203
    %v242 = vpack.c.b16 %v208, %v206
    %v243 = vpack.c.b16 %v209, %v207
    %v244 = vpack.c.b16 %v212, %v210
    %v245 = vpack.c.b16 %v213, %v211
    %v246 = vpack.c.b16 %v216, %v214
    %v247 = vpack.c.b16 %v217, %v215
    %v248 = vpack.c.b16 %v220, %v218
    %v249 = vpack.c.b16 %v221, %v219
    %v250 = vpack.c.b16 %v224, %v222
    %v251 = vpack.c.b16 %v225, %v223
    %v252 = vpack.c.b16 %v226, %v226
    %v253 = vpack.c.b16 %v227, %v227
    %vm278 = vcmask 588800
    %v280 = vsel %vm278, %v115, 0
    %vm282 = vcmask 1043456
    %v284 = vsel %vm282, %v252, 0
    %v287 = vsel %vm282, %v253, 0
    %289 = vmatprep.subr.bf16.mxu0 %v243
    %290 = vmatpush1.bf16.msra.mxu0 %v242
    %291 = vmatprep.subr.bf16.mxu0 %v241
    %292 = vmatpush1.bf16.msra.mxu0 %v240
    %293 = vmatprep.subr.bf16.mxu0 %v239
    %294 = vmatpush1.bf16.msra.mxu0 %v238
    %295 = vmatprep.subr.bf16.mxu0 %v237
    %296 = vmatpush1.bf16.msra.mxu0 %v236
    %297 = vmatprep.subr.bf16.mxu0 %v235
    %298 = vmatpush1.bf16.msra.mxu0 %v234
    %299 = vmatprep.subr.bf16.mxu0 %v233
    %300 = vmatpush1.bf16.msra.mxu0 %v232
    %301 = vmatprep.subr.bf16.mxu0 %v231
    %302 = vmatpush1.bf16.msra.mxu0 %v230
    %303 = vmatprep.subr.bf16.mxu0 %v229
    %304 = vmatpush1.bf16.msra.mxu0 %v228
    %305 = vmatprep.subr.bf16.mxu0 0
    %306 = vmatpush2.bf16.msra.mxu0 0
    %307 = vmatprep.subr.bf16.mxu0 0
    %308 = vmatpush2.bf16.msra.mxu0 0
    %309 = vmatprep.subr.bf16.mxu0 0
    %310 = vmatpush2.bf16.msra.mxu0 0
    %311 = vmatprep.subr.bf16.mxu0 %v287
    %312 = vmatpush2.bf16.msra.mxu0 %v284
    %313 = vmatprep.subr.bf16.mxu0 %v251
    %314 = vmatpush2.bf16.msra.mxu0 %v250
    %315 = vmatprep.subr.bf16.mxu0 %v249
    %316 = vmatpush2.bf16.msra.mxu0 %v248
    %317 = vmatprep.subr.bf16.mxu0 %v247
    %318 = vmatpush2.bf16.msra.mxu0 %v246
    %319 = vmatprep.subr.bf16.mxu0 %v245
    %320 = vmatpush2.bf16.msra.mxu0 %v244
    %321 = vmatprep.mubr.bf16.mxu0 %v280
    %322 = vmatmul.mubr.bf16.gmra.mxu0 %v114
    %v323 = vpop.f32.mrf.mxu0
    %v324 = vadd.f32 %v146, %v323
    %v325 = vpop.f32.mrf.mxu0
    %v326 = vadd.f32 %v150, %v325
    %v327 = vpop.f32.mrf.mxu0
    %v328 = vpop.f32.mrf.mxu0
    %329 = vdwg.mxu0
    %v330 = vmax.f32 %v324, 0.0
    %v331 = vmax.f32 %v326, 0.0
    %v332 = vpack.c.bf16 %v330, %v330
    %v333 = vpack.c.bf16 %v331, %v331
    %v334 = vld [vmem:[#allocation8] sm:$0xf]
    %v335 = vld [vmem:[#allocation8 + $0x4] sm:$0xf]
    %v336 = vld [vmem:[#allocation8 + $0x8] sm:$0xf]
    %v337 = vld [vmem:[#allocation8 + $0xc] sm:$0xf]
    %v338 = vld [vmem:[#allocation8 + $0x10] sm:$0xf]
    %v339 = vld [vmem:[#allocation8 + $0x14] sm:$0xf]
    %v340 = vld [vmem:[#allocation8 + $0x18] sm:$0xf]
    %v341 = vld [vmem:[#allocation8 + $0x1c] sm:$0xf]
    %v342 = vld [vmem:[#allocation8 + $0x20] sm:$0xf]
    %v343 = vld [vmem:[#allocation8 + $0x24] sm:$0xf]
    %v344 = vld [vmem:[#allocation8 + $0x28] sm:$0xf]
    %v345 = vld [vmem:[#allocation8 + $0x2c] sm:$0xf]
    %v346 = vld [vmem:[#allocation8 + $0x30] sm:$0xf]
    %v347 = vld [vmem:[#allocation8 + $0x34] sm:$0xf]
    %v348 = vld [vmem:[#allocation8 + $0x38] sm:$0xf]
    %v349 = vld [vmem:[#allocation8 + $0x3c] sm:$0xf]
    %v350 = vld [vmem:[#allocation8 + $0x40] sm:$0xf]
    %v351 = vld [vmem:[#allocation8 + $0x44] sm:$0xf]
    %v352 = vld [vmem:[#allocation8 + $0x48] sm:$0xf]
    %v353 = vld [vmem:[#allocation8 + $0x4c] sm:$0xf]
    %v354 = vld [vmem:[#allocation8 + $0x50] sm:$0xf]
    %v355 = vld [vmem:[#allocation8 + $0x54] sm:$0xf]
    %v356 = vld [vmem:[#allocation8 + $0x58] sm:$0xf]
    %v357 = vld [vmem:[#allocation8 + $0x5c] sm:$0xf]
    %v358 = vld [vmem:[#allocation8 + $0x60] sm:$0xf]
    %v359 = vld [vmem:[#allocation8 + $0x64] sm:$0xf]
    %v360 = vld [vmem:[#allocation8 + $0x68] sm:$0xf]
    %v361 = vld [vmem:[#allocation8 + $0x6c] sm:$0xf]
    %v362 = vld [vmem:[#allocation8 + $0x70] sm:$0xf]
    %v363 = vld [vmem:[#allocation8 + $0x74] sm:$0xf]
    %v364 = vld [vmem:[#allocation8 + $0x78] sm:$0xf]
    %v365 = vld [vmem:[#allocation8 + $0x7c] sm:$0xf]
    %v366 = vld [vmem:[%s4] sm:$0x1]
    %v368 = vlaneseq
    %v369 = vshrl.u32 %v368, 7
    %v370 = vsub.s32 0, %v369
    %v371 = vrot.slane %v366, %v370
    %v405 = vunpack.c.l.b16 %v334
    %v406 = vunpack.c.l.b16 %v335
    %v407 = vunpack.c.l.b16 %v336
    %v408 = vunpack.c.l.b16 %v337
    %v409 = vunpack.c.l.b16 %v338
    %v410 = vunpack.c.l.b16 %v339
    %v411 = vunpack.c.l.b16 %v340
    %v412 = vunpack.c.l.b16 %v341
    %v413 = vunpack.c.l.b16 %v342
    %v414 = vunpack.c.l.b16 %v343
    %v415 = vunpack.c.l.b16 %v344
    %v416 = vunpack.c.l.b16 %v345
    %v417 = vunpack.c.l.b16 %v346
    %v418 = vunpack.c.l.b16 %v347
    %v419 = vunpack.c.l.b16 %v348
    %v420 = vunpack.c.l.b16 %v349
    %v421 = vunpack.c.l.b16 %v350
    %v422 = vunpack.c.l.b16 %v351
    %v423 = vunpack.c.l.b16 %v352
    %v424 = vunpack.c.l.b16 %v353
    %v425 = vunpack.c.l.b16 %v354
    %v426 = vunpack.c.l.b16 %v355
    %v427 = vunpack.c.l.b16 %v356
    %v428 = vunpack.c.l.b16 %v357
    %v429 = vunpack.c.l.b16 %v358
    %v430 = vunpack.c.l.b16 %v359
    %v431 = vunpack.c.l.b16 %v360
    %v432 = vunpack.c.l.b16 %v361
    %v433 = vunpack.c.l.b16 %v362
    %v434 = vunpack.c.l.b16 %v363
    %v435 = vunpack.c.l.b16 %v364
    %v436 = vunpack.c.l.b16 %v365
    %v437 = vpack.c.b16 %v406, %v405
    %v438 = vpack.c.b16 %v408, %v407
    %v439 = vpack.c.b16 %v410, %v409
    %v440 = vpack.c.b16 %v412, %v411
    %v441 = vpack.c.b16 %v414, %v413
    %v442 = vpack.c.b16 %v416, %v415
    %v443 = vpack.c.b16 %v418, %v417
    %v444 = vpack.c.b16 %v420, %v419
    %v445 = vpack.c.b16 %v422, %v421
    %v446 = vpack.c.b16 %v424, %v423
    %v447 = vpack.c.b16 %v426, %v425
    %v448 = vpack.c.b16 %v428, %v427
    %v449 = vpack.c.b16 %v430, %v429
    %v450 = vpack.c.b16 %v432, %v431
    %v451 = vpack.c.b16 %v434, %v433
    %v452 = vpack.c.b16 %v436, %v435
    %469 = vmatprep.subr.bf16.mxu0 0
    %470 = vmatpush1.bf16.msra.mxu0 %v444
    %471 = vmatprep.subr.bf16.mxu0 0
    %472 = vmatpush1.bf16.msra.mxu0 %v443
    %473 = vmatprep.subr.bf16.mxu0 0
    %474 = vmatpush1.bf16.msra.mxu0 %v442
    %475 = vmatprep.subr.bf16.mxu0 0
    %476 = vmatpush1.bf16.msra.mxu0 %v441
    %477 = vmatprep.subr.bf16.mxu0 0
    %478 = vmatpush1.bf16.msra.mxu0 %v440
    %479 = vmatprep.subr.bf16.mxu0 0
    %480 = vmatpush1.bf16.msra.mxu0 %v439
    %481 = vmatprep.subr.bf16.mxu0 0
    %482 = vmatpush1.bf16.msra.mxu0 %v438
    %483 = vmatprep.subr.bf16.mxu0 0
    %484 = vmatpush1.bf16.msra.mxu0 %v437
    %485 = vmatprep.subr.bf16.mxu0 0
    %486 = vmatpush2.bf16.msra.mxu0 %v452
    %487 = vmatprep.subr.bf16.mxu0 0
    %488 = vmatpush2.bf16.msra.mxu0 %v451
    %489 = vmatprep.subr.bf16.mxu0 0
    %490 = vmatpush2.bf16.msra.mxu0 %v450
    %491 = vmatprep.subr.bf16.mxu0 0
    %492 = vmatpush2.bf16.msra.mxu0 %v449
    %493 = vmatprep.subr.bf16.mxu0 0
    %494 = vmatpush2.bf16.msra.mxu0 %v448
    %495 = vmatprep.subr.bf16.mxu0 0
    %496 = vmatpush2.bf16.msra.mxu0 %v447
    %497 = vmatprep.subr.bf16.mxu0 0
    %498 = vmatpush2.bf16.msra.mxu0 %v446
    %499 = vmatprep.subr.bf16.mxu0 0
    %500 = vmatpush2.bf16.msra.mxu0 %v445
    %501 = vmatprep.mubr.bf16.mxu0 %v333
    %502 = vmatmul.mubr.bf16.gmra.mxu0 %v332
    %v503 = vpop.f32.mrf.mxu0
    %v504 = vadd.f32 %v371, %v503
    %v505 = vpop.f32.mrf.mxu0
    %v506 = vpop.f32.mrf.mxu0
    %v507 = vpop.f32.mrf.mxu0
    %508 = vdwg.mxu0
    %v509 = vmax.f32 %v504, 0.0
    %v510 = vpack.c.bf16 %v509, %v509
    %v511 = vld [vmem:[#allocation10] sm:$0xf]
    %v512 = vld [vmem:[#allocation10 + $0x4] sm:$0xf]
    %v513 = vld [vmem:[#allocation10 + $0x8] sm:$0xf]
    %v514 = vld [vmem:[#allocation10 + $0xc] sm:$0xf]
    %v515 = vld [vmem:[#allocation10 + $0x10] sm:$0xf]
    %v516 = vld [vmem:[#allocation10 + $0x14] sm:$0xf]
    %v517 = vld [vmem:[#allocation10 + $0x18] sm:$0xf]
    %v518 = vld [vmem:[#allocation10 + $0x1c] sm:$0xf]
    %v519 = vld [vmem:[#allocation10 + $0x20] sm:$0xf]
    %v520 = vld [vmem:[#allocation10 + $0x24] sm:$0xf]
    %v521 = vld [vmem:[#allocation10 + $0x28] sm:$0xf]
    %v522 = vld [vmem:[#allocation10 + $0x2c] sm:$0xf]
    %v523 = vld [vmem:[#allocation10 + $0x30] sm:$0xf]
    %v524 = vld [vmem:[#allocation10 + $0x34] sm:$0xf]
    %v525 = vld [vmem:[#allocation10 + $0x38] sm:$0xf]
    %v526 = vld [vmem:[#allocation10 + $0x3c] sm:$0xf]
    %v527 = vld [vmem:[%s6] sm:$0x1]
    %v529 = vlaneseq
    %v530 = vshrl.u32 %v529, 7
    %v531 = vsub.s32 0, %v530
    %v532 = vrot.slane %v527, %v531
    %v550 = vunpack.c.l.b16 %v511
    %v551 = vunpack.c.l.b16 %v512
    %v552 = vunpack.c.l.b16 %v513
    %v553 = vunpack.c.l.b16 %v514
    %v554 = vunpack.c.l.b16 %v515
    %v555 = vunpack.c.l.b16 %v516
    %v556 = vunpack.c.l.b16 %v517
    %v557 = vunpack.c.l.b16 %v518
    %v558 = vunpack.c.l.b16 %v519
    %v559 = vunpack.c.l.b16 %v520
    %v560 = vunpack.c.l.b16 %v521
    %v561 = vunpack.c.l.b16 %v522
    %v562 = vunpack.c.l.b16 %v523
    %v563 = vunpack.c.l.b16 %v524
    %v564 = vunpack.c.l.b16 %v525
    %v565 = vunpack.c.l.b16 %v526
    %v566 = vpack.c.b16 %v551, %v550
    %v567 = vpack.c.b16 %v553, %v552
    %v568 = vpack.c.b16 %v555, %v554
    %v569 = vpack.c.b16 %v557, %v556
    %v570 = vpack.c.b16 %v559, %v558
    %v571 = vpack.c.b16 %v561, %v560
    %v572 = vpack.c.b16 %v563, %v562
    %v573 = vpack.c.b16 %v565, %v564
    %582 = vmatprep.subr.bf16.mxu0 0
    %583 = vmatpush1.bf16.msra.mxu0 %v573
    %584 = vmatprep.subr.bf16.mxu0 0
    %585 = vmatpush1.bf16.msra.mxu0 %v572
    %586 = vmatprep.subr.bf16.mxu0 0
    %587 = vmatpush1.bf16.msra.mxu0 %v571
    %588 = vmatprep.subr.bf16.mxu0 0
    %589 = vmatpush1.bf16.msra.mxu0 %v570
    %590 = vmatprep.subr.bf16.mxu0 0
    %591 = vmatpush1.bf16.msra.mxu0 %v569
    %592 = vmatprep.subr.bf16.mxu0 0
    %593 = vmatpush1.bf16.msra.mxu0 %v568
    %594 = vmatprep.subr.bf16.mxu0 0
    %595 = vmatpush1.bf16.msra.mxu0 %v567
    %596 = vmatprep.subr.bf16.mxu0 0
    %597 = vmatpush1.bf16.msra.mxu0 %v566
    %598 = vmatprep.subr.bf16.mxu0 0
    %599 = vmatpush2.bf16.msra.mxu0 0
    %600 = vmatprep.subr.bf16.mxu0 0
    %601 = vmatpush2.bf16.msra.mxu0 0
    %602 = vmatprep.subr.bf16.mxu0 0
    %603 = vmatpush2.bf16.msra.mxu0 0
    %604 = vmatprep.subr.bf16.mxu0 0
    %605 = vmatpush2.bf16.msra.mxu0 0
    %606 = vmatprep.subr.bf16.mxu0 0
    %607 = vmatpush2.bf16.msra.mxu0 0
    %608 = vmatprep.subr.bf16.mxu0 0
    %609 = vmatpush2.bf16.msra.mxu0 0
    %610 = vmatprep.subr.bf16.mxu0 0
    %611 = vmatpush2.bf16.msra.mxu0 0
    %612 = vmatprep.subr.bf16.mxu0 0
    %613 = vmatpush2.bf16.msra.mxu0 0
    %614 = vmatprep.mubr.bf16.mxu0 0
    %615 = vmatmul.mubr.bf16.gmra.mxu0 %v510
    %v616 = vpop.f32.mrf.mxu0
    %v617 = vadd.f32 %v532, %v616
    %v618 = vpop.f32.mrf.mxu0
    %v619 = vpop.f32.mrf.mxu0
    %v620 = vpop.f32.mrf.mxu0
    %621 = vdwg.mxu0
    %v622 = vmax.f32 %v617, 0.0
    %v623 = vpack.c.bf16 %v622, %v622
    %v624 = vld [vmem:[#allocation11] sm:$0xf]
    %v625 = vld [vmem:[#allocation11 + $0x4] sm:$0xf]
    %v626 = vld [vmem:[#allocation11 + $0x8] sm:$0xf]
    %v627 = vld [vmem:[#allocation11 + $0xc] sm:$0xf]
    %v628 = vld [vmem:[#allocation11 + $0x10] sm:$0xf]
    %v629 = vld [vmem:[#allocation11 + $0x14] sm:$0xf]
    %v630 = vld [vmem:[#allocation11 + $0x18] sm:$0xf]
    %v631 = vld [vmem:[#allocation11 + $0x1c] sm:$0xf]
    %v632 = vld [vmem:[#allocation11 + $0x20] sm:$0xf]
    %v633 = vld [vmem:[#allocation11 + $0x24] sm:$0xf]
    %v634 = vld [vmem:[#allocation11 + $0x28] sm:$0xf]
    %v635 = vld [vmem:[#allocation11 + $0x2c] sm:$0xf]
    %v636 = vld [vmem:[#allocation11 + $0x30] sm:$0xf]
    %v637 = vld [vmem:[#allocation11 + $0x34] sm:$0xf]
    %v638 = vld [vmem:[#allocation11 + $0x38] sm:$0xf]
    %v639 = vld [vmem:[#allocation11 + $0x3c] sm:$0xf]
    %v640 = vld [vmem:[%s8] sm:$0x1]
    %v642 = vlaneseq
    %v643 = vshrl.u32 %v642, 7
    %v644 = vsub.s32 0, %v643
    %v645 = vrot.slane %v640, %v644
    %v663 = vunpack.c.l.b16 %v624
    %v664 = vunpack.c.l.b16 %v625
    %v665 = vunpack.c.l.b16 %v626
    %v666 = vunpack.c.l.b16 %v627
    %v667 = vunpack.c.l.b16 %v628
    %v668 = vunpack.c.l.b16 %v629
    %v669 = vunpack.c.l.b16 %v630
    %v670 = vunpack.c.l.b16 %v631
    %v671 = vunpack.c.l.b16 %v632
    %v672 = vunpack.c.l.b16 %v633
    %v673 = vunpack.c.l.b16 %v634
    %v674 = vunpack.c.l.b16 %v635
    %v675 = vunpack.c.l.b16 %v636
    %v676 = vunpack.c.l.b16 %v637
    %v677 = vunpack.c.l.b16 %v638
    %v678 = vunpack.c.l.b16 %v639
    %v679 = vpack.c.b16 %v664, %v663
    %v680 = vpack.c.b16 %v666, %v665
    %v681 = vpack.c.b16 %v668, %v667
    %v682 = vpack.c.b16 %v670, %v669
    %v683 = vpack.c.b16 %v672, %v671
    %v684 = vpack.c.b16 %v674, %v673
    %v685 = vpack.c.b16 %v676, %v675
    %v686 = vpack.c.b16 %v678, %v677
    %695 = vmatprep.subr.bf16.mxu0 0
    %696 = vmatpush1.bf16.msra.mxu0 %v686
    %697 = vmatprep.subr.bf16.mxu0 0
    %698 = vmatpush1.bf16.msra.mxu0 %v685
    %699 = vmatprep.subr.bf16.mxu0 0
    %700 = vmatpush1.bf16.msra.mxu0 %v684
    %701 = vmatprep.subr.bf16.mxu0 0
    %702 = vmatpush1.bf16.msra.mxu0 %v683
    %703 = vmatprep.subr.bf16.mxu0 0
    %704 = vmatpush1.bf16.msra.mxu0 %v682
    %705 = vmatprep.subr.bf16.mxu0 0
    %706 = vmatpush1.bf16.msra.mxu0 %v681
    %707 = vmatprep.subr.bf16.mxu0 0
    %708 = vmatpush1.bf16.msra.mxu0 %v680
    %709 = vmatprep.subr.bf16.mxu0 0
    %710 = vmatpush1.bf16.msra.mxu0 %v679
    %711 = vmatprep.subr.bf16.mxu0 0
    %712 = vmatpush2.bf16.msra.mxu0 0
    %713 = vmatprep.subr.bf16.mxu0 0
    %714 = vmatpush2.bf16.msra.mxu0 0
    %715 = vmatprep.subr.bf16.mxu0 0
    %716 = vmatpush2.bf16.msra.mxu0 0
    %717 = vmatprep.subr.bf16.mxu0 0
    %718 = vmatpush2.bf16.msra.mxu0 0
    %719 = vmatprep.subr.bf16.mxu0 0
    %720 = vmatpush2.bf16.msra.mxu0 0
    %721 = vmatprep.subr.bf16.mxu0 0
    %722 = vmatpush2.bf16.msra.mxu0 0
    %723 = vmatprep.subr.bf16.mxu0 0
    %724 = vmatpush2.bf16.msra.mxu0 0
    %725 = vmatprep.subr.bf16.mxu0 0
    %726 = vmatpush2.bf16.msra.mxu0 0
    %727 = vmatprep.mubr.bf16.mxu0 0
    %728 = vmatmul.mubr.bf16.gmra.mxu0 %v623
    %v729 = vpop.f32.mrf.mxu0
    %v730 = vadd.f32 %v645, %v729
    %v731 = vpop.f32.mrf.mxu0
    %v732 = vpop.f32.mrf.mxu0
    %v733 = vpop.f32.mrf.mxu0
    %734 = vdwg.mxu0
    %v735 = vsub.f32 0.0, %v730
    %v736 = vmul.f32 %v735, 1.442695
    %v737 = vpow.pop %v736
    %v738 = vadd.f32 %v737, 1.0
    %v739 = vrcp.pop %v738
    %740 = vst [vmem:[#allocation13] sm:$0xff] %v739
    // Predicated region
    $region62: #{decoder_gumbel_forward.1} parent=1 // pred_check
      _
    $region63: #{decoder_gumbel_forward.1} parent=1 // pred_check_branch
      %742 = sbr.rel (0) target = $region65
    $region64: #{decoder_gumbel_forward.1} parent=1 // pred_region
      %s744 = ssub.s32 128, 128
      %745 = vsyncadd [#allocation4], %s744
      %s747 = sshll.u32 [#allocation13], 4
      %s748 = int_to_ptr.vmem [resolvable:$true] %s747
      %750 = dma.vmem_to_hbm [thread:$0]  %s748, 128, %s9, [#allocation4]
    $region65: #{decoder_gumbel_forward.1} parent=1 // pred_fallthru
      _
    // Predicated region
    $region66: #{decoder_gumbel_forward.1} parent=1 // pred_check
      _
    $region67: #{decoder_gumbel_forward.1} parent=1 // pred_check_branch
      %752 = sbr.rel (0) target = $region69
    $region68: #{decoder_gumbel_forward.1} parent=1 // pred_region
      %753 = dma.done [#allocation4], 128
    $region69: #{decoder_gumbel_forward.1} parent=1 // pred_fallthru
      _
    %754 = vsyncpa [#allocation3], 1
    %755 = vsyncpa [#allocation6], 1
    %756 = vsyncpa [#allocation9], 1
    %757 = vsyncpa [#allocation12], 1
    %758 = vsyncpa [#allocation4], 1

</llo_original>
